<compile_context>
chip_gen: v7x
topology: tpu7x:2x2x1
jax: 0.10.0
libtpu: 0.0.40
codegen_flags: <defaults>
</compile_context>

<pallas_src>
import functools

import jax
import jax.numpy as jnp
from jax import lax
from jax.experimental import pallas as pl
from jax.experimental.pallas import tpu as pltpu

EPS = 1e-12


# ----------------------------------------------------------------------------
# Kernel 1: spectral-norm power iteration (outputs u, v, sigma only)
# ----------------------------------------------------------------------------
def _power_iteration_kernel(w_ref, u_ref, u_out_ref, v_out_ref, sigma_ref, *,
                            power_iterations):
    w = w_ref[...].astype(jnp.float32)            # (height, width)
    u = u_ref[...].astype(jnp.float32)            # (1, height)
    v = jnp.zeros((1, w.shape[1]), jnp.float32)
    wv_norm = jnp.float32(0.0)
    for _ in range(power_iterations):
        # v = l2normalize(W^T u)   (row-vector form; no transpose of W needed)
        wtu = jnp.dot(u, w, preferred_element_type=jnp.float32)     # (1, width)
        v = wtu / (jnp.sqrt(jnp.sum(wtu * wtu)) + EPS)
        # u = l2normalize(W v)     (contract on the width axis of W)
        wv = lax.dot_general(v, w, (((1,), (1,)), ((), ())),
                             preferred_element_type=jnp.float32)    # (1, height)
        wv_norm = jnp.sqrt(jnp.sum(wv * wv))
        u = wv / (wv_norm + EPS)
    # sigma = u . (W v) == ||W v|| of the last iteration -- no extra matmul.
    u_out_ref[...] = u.astype(u_out_ref.dtype)
    v_out_ref[...] = v.astype(v_out_ref.dtype)
    sigma_ref[...] = jnp.full((1, 1), wv_norm, dtype=sigma_ref.dtype)


def spectral_norm_power_iteration(w_bar, u, power_iterations=1):
    """w_bar: PyTorch-shaped weight (height, ...); u: (height,).
    Returns (u_new (1,height), v_new (1,width), sigma (1,1))."""
    assert power_iterations >= 1
    height = w_bar.shape[0]
    w2d = w_bar.reshape(height, -1)
    width = w2d.shape[1]
    u2d = u.reshape(1, height).astype(jnp.float32)

    kernel = functools.partial(_power_iteration_kernel,
                               power_iterations=power_iterations)
    u_new, v_new, sigma = pl.pallas_call(
        kernel,
        grid=(1,),
        in_specs=[
            pl.BlockSpec((height, width), lambda i: (0, 0)),
            pl.BlockSpec((1, height), lambda i: (0, 0)),
        ],
        out_specs=(
            pl.BlockSpec((1, height), lambda i: (0, 0)),
            pl.BlockSpec((1, width), lambda i: (0, 0)),
            pl.BlockSpec((1, 1), lambda i: (0, 0)),
        ),
        out_shape=(
            jax.ShapeDtypeStruct((1, height), jnp.float32),
            jax.ShapeDtypeStruct((1, width), jnp.float32),
            jax.ShapeDtypeStruct((1, 1), jnp.float32),
        ),
        input_output_aliases={1: 0},   # u buffer updated in place (no extra DMA)
        compiler_params=pltpu.CompilerParams(
            dimension_semantics=("arbitrary",)),
    )(w2d, u2d)
    return u_new, v_new, sigma


# ----------------------------------------------------------------------------
# Lane-rotation helper: probe pltpu.roll direction / support once per shape so
# the conv kernel can use the cheap XLU rotation path and fall back to an
# explicit slice+concat rotation otherwise.
# ----------------------------------------------------------------------------
@functools.lru_cache(maxsize=None)
def _roll_mode(rows: int, cols: int) -> int:
    """+1 if pltpu.roll matches jnp.roll, -1 if opposite direction, 0 fallback."""
    def kern(x_ref, o_ref):
        o_ref[...] = pltpu.roll(x_ref[...], 1, 1)
    try:
        x = jnp.arange(rows * cols, dtype=jnp.float32).reshape(rows, cols)
        y = pl.pallas_call(
            kern, out_shape=jax.ShapeDtypeStruct((rows, cols), jnp.float32))(x)
        if bool(jnp.array_equal(y, jnp.roll(x, 1, axis=1))):
            return 1
        if bool(jnp.array_equal(y, jnp.roll(x, -1, axis=1))):
            return -1
        return 0
    except Exception:
        return 0


# ----------------------------------------------------------------------------
# Kernel 2: Conv2d(x, w_bar / sigma) + bias as ONE deep MXU contraction.
#   x block : (1, Cin, H*W)        lane-dense activation slab
#   w block : (Cout, KH*KW*Cin)    lane dim = KH*KW*Cin
#   sigma   : (1, 1) f32 in SMEM   (spectral norm folded into the conv)
# ----------------------------------------------------------------------------
def _conv2d_sn_kernel(x_ref, w_ref, b_ref, sigma_ref, o_ref, *,
                      KH, KW, H, W, pad, roll_mode, compute_dtype):
    HW = H * W
    x = x_ref[0].astype(compute_dtype)                       # (Cin, H*W)

    def shift(arr, s):
        # out[:, i] = arr[:, (i + s) % HW]; wrapped entries are masked below.
        k = s % HW
        if k == 0:
            return arr
        if roll_mode == 1:       # pltpu.roll has jnp.roll semantics
            return pltpu.roll(arr, HW - k, 1)
        if roll_mode == -1:      # opposite rotation direction
            return pltpu.roll(arr, k, 1)
        return jnp.concatenate([arr[:, k:], arr[:, :k]], axis=1)

    # In-kernel zero padding: iota-based edge masks (no jnp.pad HBM pass).
    lin = lax.broadcasted_iota(jnp.int32, (1, HW), 1)
    hh = lin // W
    ww = lin - hh * W
    zero = jnp.zeros((), compute_dtype)

    patches = []
    for ky in range(KH):
        dy = ky - pad
        for kx in range(KW):
            dx = kx - pad
            shifted = shift(x, dy * W + dx)
            valid = ((hh >= -dy) & (hh < H - dy) &
                     (ww >= -dx) & (ww < W - dx))
            patches.append(jnp.where(valid, shifted, zero))
    slab = jnp.concatenate(patches, axis=0)                   # (KH*KW*Cin, H*W)

    # Spectral normalization folded in: scale the tiny weight tile once in VMEM.
    wn = (w_ref[...].astype(jnp.float32) / sigma_ref[0, 0]).astype(compute_dtype)

    acc = jnp.dot(wn, slab, preferred_element_type=jnp.float32)   # (Cout, H*W)
    acc = acc + b_ref[...].astype(jnp.float32)                    # (Cout, 1) bcast
    o_ref[0] = acc.astype(o_ref.dtype)


def conv2d_spectral_norm(x, w_bar, bias, sigma, *, padding=1,
                         compute_dtype=jnp.float32):
    """Conv2d(x, w_bar / sigma) + bias.  NCHW / OIHW, stride 1, 'same' padding."""
    N, Cin, H, W = x.shape
    Cout, Cin_w, KH, KW = w_bar.shape
    assert Cin_w == Cin
    # TODO(synk): only stride-1 symmetric 'same' padding (2*pad == K-1) is
    # implemented (the configuration SAGAN's spectral-norm convs use).
    assert KH == 2 * padding + 1 and KW == 2 * padding + 1
    HW = H * W

    x_flat = x.reshape(N, Cin, HW)                        # lane axis = H*W
    # Repack weight so slab row (tap*Cin + c) matches tap (ky*KW+kx), channel c.
    w_mat = jnp.transpose(w_bar, (0, 2, 3, 1)).reshape(Cout, KH * KW * Cin)
    b_col = bias.reshape(Cout, 1)

    kernel = functools.partial(
        _conv2d_sn_kernel, KH=KH, KW=KW, H=H, W=W, pad=padding,
        roll_mode=_roll_mode(Cin, HW), compute_dtype=compute_dtype)

    out = pl.pallas_call(
        kernel,
        grid=(N,),
        in_specs=[
            pl.BlockSpec((1, Cin, HW), lambda n: (n, 0, 0)),
            pl.BlockSpec((Cout, KH * KW * Cin), lambda n: (0, 0)),
            pl.BlockSpec((Cout, 1), lambda n: (0, 0)),
            pl.BlockSpec(memory_space=pltpu.MemorySpace.SMEM),   # sigma (1, 1)
        ],
        out_specs=pl.BlockSpec((1, Cout, HW), lambda n: (n, 0, 0)),
        out_shape=jax.ShapeDtypeStruct((N, Cout, HW), x.dtype),
        compiler_params=pltpu.CompilerParams(
            dimension_semantics=("parallel",)),
        # TODO(synk): for SAGAN-sized layers add a second parallel grid axis
        # (Cout or spatial tiles with halos) and set vmem_limit_bytes for
        # v7x's 64 MiB VMEM.
    )(x_flat, w_mat, b_col, sigma)
    return out.reshape(N, Cout, H, W)


# ----------------------------------------------------------------------------
# SpectralNorm(Conv2d).forward
# ----------------------------------------------------------------------------
def spectral_norm_conv2d_forward(x, w_bar, bias, u, *, power_iterations=1,
                                 padding=1, compute_dtype=jnp.float32):
    u_new, v_new, sigma = spectral_norm_power_iteration(
        w_bar, u, power_iterations=power_iterations)
    out = conv2d_spectral_norm(x, w_bar, bias, sigma, padding=padding,
                               compute_dtype=compute_dtype)
    # In PyTorch u/v are buffers updated in place; here they are returned.
    return out, u_new[0], v_new[0], sigma[0, 0]


if __name__ == "__main__":
    key = jax.random.PRNGKey(0)
    k1, k2, k3, k4, k5 = jax.random.split(key, 5)

    N, Cin, H, W = 2, 4, 16, 16
    Cout, KH, KW = 8, 3, 3
    power_iterations = 1

    x = jax.random.normal(k1, (N, Cin, H, W), jnp.float32)
    w_bar = jax.random.normal(k2, (Cout, Cin, KH, KW), jnp.float32) * 0.1
    bias = jax.random.normal(k3, (Cout,), jnp.float32) * 0.1

    # _make_params(): u ~ N(0,1) of size height, v ~ N(0,1) of size width,
    # both l2-normalized at init (v is recomputed before use).
    height = Cout
    width = Cin * KH * KW
    u0 = jax.random.normal(k4, (height,), jnp.float32)
    u0 = u0 / (jnp.linalg.norm(u0) + EPS)
    v0 = jax.random.normal(k5, (width,), jnp.float32)
    v0 = v0 / (jnp.linalg.norm(v0) + EPS)

    out, u_new, v_new, sigma = spectral_norm_conv2d_forward(
        x, w_bar, bias, u0, power_iterations=power_iterations, padding=1)
    jax.block_until_ready(out)

    # Pure-JAX reference of the same forward pass.
    w2d = w_bar.reshape(height, -1)
    u_r = u0
    for _ in range(power_iterations):
        v_r = w2d.T @ u_r
        v_r = v_r / (jnp.linalg.norm(v_r) + EPS)
        u_r = w2d @ v_r
        u_r = u_r / (jnp.linalg.norm(u_r) + EPS)
    sigma_r = u_r @ (w2d @ v_r)
    w_sn_r = w_bar / sigma_r
    out_r = lax.conv_general_dilated(
        x, w_sn_r, window_strides=(1, 1), padding=((1, 1), (1, 1)),
        dimension_numbers=("NCHW", "OIHW", "NCHW")) + bias.reshape(1, Cout, 1, 1)

    assert out.shape == (N, Cout, H, W)
    assert jnp.allclose(out, out_r, atol=1e-3, rtol=1e-3)
    assert jnp.allclose(sigma, sigma_r, atol=1e-4, rtol=1e-4)

    print("KERNEL_OK")
</pallas_src>

<mosaic_0001>
module attributes {stable_mosaic.version = 11 : i64} {
  func.func @_power_iteration_kernel(%arg0: i32, %arg1: memref<8x36xf32, #tpu.memory_space<vmem>>, %arg2: memref<1x8xf32, #tpu.memory_space<vmem>>, %arg3: memref<1x8xf32, #tpu.memory_space<vmem>>, %arg4: memref<1x36xf32, #tpu.memory_space<vmem>>, %arg5: memref<1x1xf32, #tpu.memory_space<vmem>>) attributes {dimension_semantics = [#tpu.dimension_semantics<arbitrary>], iteration_bounds = array<i64: 1>, scalar_prefetch = 0 : i64, scratch_operands = 0 : i64, tpu.core_type = #tpu.core_type<tc>, window_params = [{pipeline_mode = #tpu.pipeline_mode<synchronous>, transform_indices = @transform_0, window_bounds = array<i64: 8, 36>}, {pipeline_mode = #tpu.pipeline_mode<synchronous>, transform_indices = @transform_1, window_bounds = array<i64: 1, 8>}, {pipeline_mode = #tpu.pipeline_mode<synchronous>, transform_indices = @transform_2, window_bounds = array<i64: 1, 8>}, {pipeline_mode = #tpu.pipeline_mode<synchronous>, transform_indices = @transform_3, window_bounds = array<i64: 1, 36>}, {pipeline_mode = #tpu.pipeline_mode<synchronous>, transform_indices = @transform_4, window_bounds = array<i64: 1, 1>}]} {
    %c0 = arith.constant 0 : index
    %c0_0 = arith.constant 0 : index
    %0 = vector.load %arg1[%c0, %c0_0] : memref<8x36xf32, #tpu.memory_space<vmem>>, vector<8x36xf32>
    %c0_1 = arith.constant 0 : index
    %c0_2 = arith.constant 0 : index
    %1 = vector.load %arg2[%c0_1, %c0_2] : memref<1x8xf32, #tpu.memory_space<vmem>>, vector<1x8xf32>
    %cst = arith.constant dense<0.000000e+00> : vector<1x36xf32>
    %2 = tpu.matmul %1, %0, %cst {dimension_numbers = #tpu.dot_dimension_numbers<[1], [0], [0], [1], [0, 0, 1, 1], [], []>} : vector<1x8xf32>, vector<8x36xf32>, vector<1x36xf32> -> vector<1x36xf32>
    %3 = arith.mulf %2, %2 : vector<1x36xf32>
    %4 = vector.shape_cast %3 : vector<1x36xf32> to vector<1x1x36xf32>
    %cst_3 = arith.constant dense<0.000000e+00> : vector<1xf32>
    %5 = vector.multi_reduction <add>, %4, %cst_3 [1, 2] : vector<1x1x36xf32> to vector<1xf32>
    %6 = vector.shape_cast %5 : vector<1xf32> to vector<1x1x1xf32>
    %7 = vector.extract %6[0, 0, 0] : f32 from vector<1x1x1xf32>
    %8 = math.sqrt %7 : f32
    %cst_4 = arith.constant 9.99999996E-13 : f32
    %9 = arith.addf %8, %cst_4 : f32
    %10 = vector.broadcast %9 : f32 to vector<1x36xf32>
    %11 = arith.divf %2, %10 : vector<1x36xf32>
    %cst_5 = arith.constant dense<0.000000e+00> : vector<1x8xf32>
    %12 = tpu.matmul %11, %0, %cst_5 {dimension_numbers = #tpu.dot_dimension_numbers<[1], [1], [0], [0], [0, 0, 1, 0], [], []>} : vector<1x36xf32>, vector<8x36xf32>, vector<1x8xf32> -> vector<1x8xf32>
    %13 = arith.mulf %12, %12 : vector<1x8xf32>
    %14 = vector.shape_cast %13 : vector<1x8xf32> to vector<1x1x8xf32>
    %cst_6 = arith.constant dense<0.000000e+00> : vector<1xf32>
    %15 = vector.multi_reduction <add>, %14, %cst_6 [1, 2] : vector<1x1x8xf32> to vector<1xf32>
    %16 = vector.shape_cast %15 : vector<1xf32> to vector<1x1x1xf32>
    %17 = vector.extract %16[0, 0, 0] : f32 from vector<1x1x1xf32>
    %18 = math.sqrt %17 : f32
    %cst_7 = arith.constant 9.99999996E-13 : f32
    %19 = arith.addf %18, %cst_7 : f32
    %20 = vector.broadcast %19 : f32 to vector<1x8xf32>
    %21 = arith.divf %12, %20 : vector<1x8xf32>
    %c0_8 = arith.constant 0 : index
    %c0_9 = arith.constant 0 : index
    %22 = vector.load %arg3[%c0_8, %c0_9] : memref<1x8xf32, #tpu.memory_space<vmem>>, vector<1x8xf32>
    tpu.vector_store %arg3[%c0_8, %c0_9], %21 {strides = array<i32>} : memref<1x8xf32, #tpu.memory_space<vmem>>, vector<1x8xf32>,
    %c0_10 = arith.constant 0 : index
    %c0_11 = arith.constant 0 : index
    %23 = vector.load %arg4[%c0_10, %c0_11] : memref<1x36xf32, #tpu.memory_space<vmem>>, vector<1x36xf32>
    tpu.vector_store %arg4[%c0_10, %c0_11], %11 {strides = array<i32>} : memref<1x36xf32, #tpu.memory_space<vmem>>, vector<1x36xf32>,
    %24 = vector.broadcast %18 : f32 to vector<1x1xf32>
    %c0_12 = arith.constant 0 : index
    %c0_13 = arith.constant 0 : index
    %25 = vector.load %arg5[%c0_12, %c0_13] : memref<1x1xf32, #tpu.memory_space<vmem>>, vector<1x1xf32>
    tpu.vector_store %arg5[%c0_12, %c0_13], %24 {strides = array<i32>} : memref<1x1xf32, #tpu.memory_space<vmem>>, vector<1x1xf32>,
    return
  }
  func.func @transform_0(%arg0: i32) -> (i32, i32) {
    %c0_i32 = arith.constant 0 : i32
    %c0_i32_0 = arith.constant 0 : i32
    %c0_i32_1 = arith.constant 0 : i32
    return %c0_i32, %c0_i32_0 : i32, i32
  }
  func.func @transform_1(%arg0: i32) -> (i32, i32) {
    %c0_i32 = arith.constant 0 : i32
    %c0_i32_0 = arith.constant 0 : i32
    %c0_i32_1 = arith.constant 0 : i32
    return %c0_i32, %c0_i32_0 : i32, i32
  }
  func.func @transform_2(%arg0: i32) -> (i32, i32) {
    %c0_i32 = arith.constant 0 : i32
    %c0_i32_0 = arith.constant 0 : i32
    %c0_i32_1 = arith.constant 0 : i32
    return %c0_i32, %c0_i32_0 : i32, i32
  }
  func.func @transform_3(%arg0: i32) -> (i32, i32) {
    %c0_i32 = arith.constant 0 : i32
    %c0_i32_0 = arith.constant 0 : i32
    %c0_i32_1 = arith.constant 0 : i32
    return %c0_i32, %c0_i32_0 : i32, i32
  }
  func.func @transform_4(%arg0: i32) -> (i32, i32) {
    %c0_i32 = arith.constant 0 : i32
    %c0_i32_0 = arith.constant 0 : i32
    %c0_i32_1 = arith.constant 0 : i32
    return %c0_i32, %c0_i32_0 : i32, i32
  }
}

</mosaic_0001>

<llo_original>
// kernel: tpu_custom_call.1
$region0: #{tpu_custom_call.1}
  #allocation0 [shape = 'u32[]', space=smem, size = 0x4, offset = 0x4, fixed_abs, tag = 'smem constant byte address 0x4 - core index']
  #allocation1 [shape = 'u32[144,128]{1,0:T(1,128)}', space=vmem, size = 0x12000, scoped, tag = 'internal scratch']
  %s0 = inlined_call_operand.hbm [shape: f32[8,36], index: 0, kind: input, shape index: {}]
  %s1 = inlined_call_operand.hbm [shape: f32[1,8], index: 1, kind: input, shape index: {}, may-alias: {1,2}]
  %s2 = inlined_call_operand.hbm [shape: f32[1,8], index: 2, kind: output, shape index: {0}, may-alias: {1,2}]
  %s3 = inlined_call_operand.hbm [shape: f32[1,36], index: 3, kind: output, shape index: {1}]
  %s4 = inlined_call_operand.hbm [shape: f32[1,1], index: 4, kind: output, shape index: {2}]
  %5 = xla_tuple %s2, %s3, %s4
  %s6 = sld [smem:[#allocation0]]
  $region42: #{tpu_custom_call.1} parent=0
    _
  %s8 = ssub.s32 1, %s6
  %s9 = scalar_select 0, %s8, %s6
  $region1: #{tpu_custom_call.1} parent=0
    #allocation2 [shape = 'u8[4096]{0}', space=vmem, size = 0x1000, scoped, tag = 'input window, operand 0, single buffered']
    #allocation3 [shape = 's32[1]{0}', space=sflag, size = 0x4, scoped, tag = 'scoped memory for tpu_custom_call.1']
    #allocation4 [shape = 's32[1]{0}', space=sflag, size = 0x4, scoped, tag = 'scoped memory for tpu_custom_call.1']
    #allocation5 [shape = 'u8[512]{0}', space=vmem, size = 0x400, scoped, tag = 'input window, operand 1, single buffered']
    #allocation6 [shape = 's32[1]{0}', space=sflag, size = 0x4, scoped, tag = 'scoped memory for tpu_custom_call.1']
    #allocation7 [shape = 'u8[512]{0}', space=vmem, size = 0x400, scoped, tag = 'output window, operand 0, single buffered']
    #allocation8 [shape = 'u8[512]{0}', space=vmem, size = 0x400, scoped, tag = 'output window, operand 1, single buffered']
    #allocation9 [shape = 's32[1]{0}', space=sflag, size = 0x4, scoped, tag = 'scoped memory for tpu_custom_call.1']
    #allocation10 [shape = 'u8[512]{0}', space=vmem, size = 0x400, scoped, tag = 'output window, operand 2, single buffered']
    %10 = vsyncpa [#allocation3], 0
    %11 = vsyncpa [#allocation6], 0
    %12 = vsyncpa [#allocation4], 0
    %13 = vsyncpa [#allocation9], 0
    // Predicated region
    $region2: #{tpu_custom_call.1} parent=1 // pred_check
      _
    $region3: #{tpu_custom_call.1} parent=1 // pred_check_branch
      %15 = sbr.rel (0) target = $region5
    $region4: #{tpu_custom_call.1} parent=1 // pred_region
      %s17 = ssub.s32 128, 128
      %18 = vsyncadd [#allocation3], %s17
      %s20 = sshll.u32 [#allocation2], 4
      %s21 = int_to_ptr.vmem [resolvable:$true] %s20
      %23 = dma.hbm_to_vmem [thread:$0]  %s0, 128, %s21, [#allocation3]
    $region5: #{tpu_custom_call.1} parent=1 // pred_fallthru
      _
    // Predicated region
    $region6: #{tpu_custom_call.1} parent=1 // pred_check
      _
    $region7: #{tpu_custom_call.1} parent=1 // pred_check_branch
      %25 = sbr.rel (0) target = $region9
    $region8: #{tpu_custom_call.1} parent=1 // pred_region
      %s27 = ssub.s32 16, 16
      %28 = vsyncadd [#allocation6], %s27
      %s30 = sshll.u32 [#allocation5], 4
      %s31 = int_to_ptr.vmem [resolvable:$true] %s30
      %33 = dma.hbm_to_vmem [thread:$0]  %s1, 16, %s31, [#allocation6]
    $region9: #{tpu_custom_call.1} parent=1 // pred_fallthru
      _
    // Predicated region
    $region10: #{tpu_custom_call.1} parent=1 // pred_check
      _
    $region11: #{tpu_custom_call.1} parent=1 // pred_check_branch
      %35 = sbr.rel (0) target = $region13
    $region12: #{tpu_custom_call.1} parent=1 // pred_region
      %36 = dma.done [#allocation3], 128
    $region13: #{tpu_custom_call.1} parent=1 // pred_fallthru
      _
    // Predicated region
    $region14: #{tpu_custom_call.1} parent=1 // pred_check
      _
    $region15: #{tpu_custom_call.1} parent=1 // pred_check_branch
      %38 = sbr.rel (0) target = $region17
    $region16: #{tpu_custom_call.1} parent=1 // pred_region
      %39 = dma.done [#allocation6], 16
    $region17: #{tpu_custom_call.1} parent=1 // pred_fallthru
      _
    %v40 = vld [vmem:[#allocation2] sm:$0xff]
    %v41 = vld [vmem:[#allocation5] sm:$0x1]
    %vm42 = vcmask 64512
    %v44 = vsel %vm42, %v41, 0
    %46 = vmatprep.subr.mxu0 0.0
    %47 = vmatpush1.msra.mxu0 %v40
    %48 = vmatprep.subr.mxu0 0.0
    %49 = vmatpush1.msra.mxu0 0.0
    %50 = vmatprep.subr.mxu0 0.0
    %51 = vmatpush1.msra.mxu0 0.0
    %52 = vmatprep.subr.mxu0 0.0
    %53 = vmatpush1.msra.mxu0 0.0
    %54 = vmatprep.subr.mxu0 0.0
    %55 = vmatpush1.msra.mxu0 0.0
    %56 = vmatprep.subr.mxu0 0.0
    %57 = vmatpush1.msra.mxu0 0.0
    %58 = vmatprep.subr.mxu0 0.0
    %59 = vmatpush1.msra.mxu0 0.0
    %60 = vmatprep.subr.mxu0 0.0
    %61 = vmatpush1.msra.mxu0 0.0
    %62 = vmatprep.subr.mxu0 0.0
    %63 = vmatpush1.msra.mxu0 0.0
    %64 = vmatprep.subr.mxu0 0.0
    %65 = vmatpush1.msra.mxu0 0.0
    %66 = vmatprep.subr.mxu0 0.0
    %67 = vmatpush1.msra.mxu0 0.0
    %68 = vmatprep.subr.mxu0 0.0
    %69 = vmatpush1.msra.mxu0 0.0
    %70 = vmatprep.subr.mxu0 0.0
    %71 = vmatpush1.msra.mxu0 0.0
    %72 = vmatprep.subr.mxu0 0.0
    %73 = vmatpush1.msra.mxu0 0.0
    %74 = vmatprep.subr.mxu0 0.0
    %75 = vmatpush1.msra.mxu0 0.0
    %76 = vmatprep.subr.mxu0 0.0
    %77 = vmatpush1.msra.mxu0 0.0
    %78 = vmatprep.subr.mxu0 0.0
    %79 = vmatpush1.msra.mxu0 0.0
    %80 = vmatprep.subr.mxu0 0.0
    %81 = vmatpush1.msra.mxu0 0.0
    %82 = vmatprep.subr.mxu0 0.0
    %83 = vmatpush1.msra.mxu0 0.0
    %84 = vmatprep.subr.mxu0 0.0
    %85 = vmatpush1.msra.mxu0 0.0
    %86 = vmatprep.subr.mxu0 0.0
    %87 = vmatpush1.msra.mxu0 0.0
    %88 = vmatprep.subr.mxu0 0.0
    %89 = vmatpush1.msra.mxu0 0.0
    %90 = vmatprep.subr.mxu0 0.0
    %91 = vmatpush1.msra.mxu0 0.0
    %92 = vmatprep.subr.mxu0 0.0
    %93 = vmatpush1.msra.mxu0 0.0
    %94 = vmatprep.subr.mxu0 0.0
    %95 = vmatpush1.msra.mxu0 0.0
    %96 = vmatprep.subr.mxu0 0.0
    %97 = vmatpush1.msra.mxu0 0.0
    %98 = vmatprep.subr.mxu0 0.0
    %99 = vmatpush1.msra.mxu0 0.0
    %100 = vmatprep.subr.mxu0 0.0
    %101 = vmatpush1.msra.mxu0 0.0
    %102 = vmatprep.subr.mxu0 0.0
    %103 = vmatpush1.msra.mxu0 0.0
    %104 = vmatprep.subr.mxu0 0.0
    %105 = vmatpush1.msra.mxu0 0.0
    %106 = vmatprep.subr.mxu0 0.0
    %107 = vmatpush1.msra.mxu0 0.0
    %108 = vmatprep.subr.mxu0 0.0
    %109 = vmatpush1.msra.mxu0 0.0
    %110 = vmatprep.mubr.f32.mxu0 0.0
    %111 = vmatmul.mubr.f32.gmra.mrb[0].mxu0 %v44
    %v112 = vpop.f32.mrb[0].mxu0
    %v113 = vadd.f32 0.0, %v112
    %v114 = vpop.f32.mrb[0].mxu0
    %115 = vdwg.mxu0
    %v116 = vmul.f32 %v113, %v113
    %vm117 = vcmask 286720
    %v118 = vsel %vm117, %v116, 0.0
    %119 = vadd.xlane.f32.xlu0 %v118
    %v120 = vpop.xlane.xlu0 %119
    %v121 = vrot.slane %v120, 4
    %v122 = vadd.f32 %v120, %v121
    %v123 = vrot.slane %v122, 2
    %v124 = vadd.f32 %v122, %v123
    %v125 = vrot.slane %v124, 1
    %v126 = vadd.f32 %v124, %v125
    %s127 = vtos %v126
    %v128 = vstv %s127
    %v129 = vrsqrt.pop %v128
    %v130 = vmul.f32 %v128, %v129
    %vm131 = vcmp.eq.f32.partialorder %v128, inf
    %v132 = vsel %vm131, %v128, %v130
    %vm133 = vcmp.eq.f32.partialorder %v128, 0.0
    %v134 = vand.u32 %v128, 2147483648
    %v135 = vsel %vm133, %v134, %v132
    %s136 = vtos %v135
    %s137 = sadd.f32 %s136, 1e-12
    %v138 = vstv %s137
    %v139 = vrcp.pop %v138
    %v140 = vmul.f32 %v113, %v139
    %vm141 = vcmask 293888
    %v143 = vsel %vm141, %v140, 0
    %v146 = vsel %vm141, %v40, 0
    %148 = vmatprep.subr.mxu0 0.0
    %149 = vmatpush1.xpose.msra.mxu0 %v146
    %150 = vmatprep.subr.mxu0 0.0
    %151 = vmatpush1.xpose.msra.mxu0 0.0
    %152 = vmatprep.subr.mxu0 0.0
    %153 = vmatpush1.xpose.msra.mxu0 0.0
    %154 = vmatprep.subr.mxu0 0.0
    %155 = vmatpush1.xpose.msra.mxu0 0.0
    %156 = vmatprep.subr.mxu0 0.0
    %157 = vmatpush1.xpose.msra.mxu0 0.0
    %158 = vmatprep.subr.mxu0 0.0
    %159 = vmatpush1.xpose.msra.mxu0 0.0
    %160 = vmatprep.subr.mxu0 0.0
    %161 = vmatpush1.xpose.msra.mxu0 0.0
    %162 = vmatprep.subr.mxu0 0.0
    %163 = vmatpush1.xpose.msra.mxu0 0.0
    %164 = vmatprep.subr.mxu0 0.0
    %165 = vmatpush1.xpose.msra.mxu0 0.0
    %166 = vmatprep.subr.mxu0 0.0
    %167 = vmatpush1.xpose.msra.mxu0 0.0
    %168 = vmatprep.subr.mxu0 0.0
    %169 = vmatpush1.xpose.msra.mxu0 0.0
    %170 = vmatprep.subr.mxu0 0.0
    %171 = vmatpush1.xpose.msra.mxu0 0.0
    %172 = vmatprep.subr.mxu0 0.0
    %173 = vmatpush1.xpose.msra.mxu0 0.0
    %174 = vmatprep.subr.mxu0 0.0
    %175 = vmatpush1.xpose.msra.mxu0 0.0
    %176 = vmatprep.subr.mxu0 0.0
    %177 = vmatpush1.xpose.msra.mxu0 0.0
    %178 = vmatprep.subr.mxu0 0.0
    %179 = vmatpush1.xpose.msra.mxu0 0.0
    %180 = vmatprep.subr.mxu0 0.0
    %181 = vmatpush1.xpose.msra.mxu0 0.0
    %182 = vmatprep.subr.mxu0 0.0
    %183 = vmatpush1.xpose.msra.mxu0 0.0
    %184 = vmatprep.subr.mxu0 0.0
    %185 = vmatpush1.xpose.msra.mxu0 0.0
    %186 = vmatprep.subr.mxu0 0.0
    %187 = vmatpush1.xpose.msra.mxu0 0.0
    %188 = vmatprep.subr.mxu0 0.0
    %189 = vmatpush1.xpose.msra.mxu0 0.0
    %190 = vmatprep.subr.mxu0 0.0
    %191 = vmatpush1.xpose.msra.mxu0 0.0
    %192 = vmatprep.subr.mxu0 0.0
    %193 = vmatpush1.xpose.msra.mxu0 0.0
    %194 = vmatprep.subr.mxu0 0.0
    %195 = vmatpush1.xpose.msra.mxu0 0.0
    %196 = vmatprep.subr.mxu0 0.0
    %197 = vmatpush1.xpose.msra.mxu0 0.0
    %198 = vmatprep.subr.mxu0 0.0
    %199 = vmatpush1.xpose.msra.mxu0 0.0
    %200 = vmatprep.subr.mxu0 0.0
    %201 = vmatpush1.xpose.msra.mxu0 0.0
    %202 = vmatprep.subr.mxu0 0.0
    %203 = vmatpush1.xpose.msra.mxu0 0.0
    %204 = vmatprep.subr.mxu0 0.0
    %205 = vmatpush1.xpose.msra.mxu0 0.0
    %206 = vmatprep.subr.mxu0 0.0
    %207 = vmatpush1.xpose.msra.mxu0 0.0
    %208 = vmatprep.subr.mxu0 0.0
    %209 = vmatpush1.xpose.msra.mxu0 0.0
    %210 = vmatprep.subr.mxu0 0.0
    %211 = vmatpush1.xpose.msra.mxu0 0.0
    %212 = vmatprep.mubr.f32.mxu0 0.0
    %213 = vmatmul.mubr.f32.gmra.mrb[0].mxu0 %v143
    %v214 = vpop.f32.mrb[0].mxu0
    %v215 = vadd.f32 0.0, %v214
    %v216 = vpop.f32.mrb[0].mxu0
    %217 = vdwg.mxu0
    %v218 = vmul.f32 %v215, %v215
    %vm219 = vcmask 57344
    %v220 = vsel %vm219, %v218, 0.0
    %221 = vadd.xlane.f32.xlu0 %v220
    %v222 = vpop.xlane.xlu0 %221
    %v223 = vrot.slane %v222, 4
    %v224 = vadd.f32 %v222, %v223
    %v225 = vrot.slane %v224, 2
    %v226 = vadd.f32 %v224, %v225
    %v227 = vrot.slane %v226, 1
    %v228 = vadd.f32 %v226, %v227
    %s229 = vtos %v228
    %v230 = vstv %s229
    %v231 = vrsqrt.pop %v230
    %v232 = vmul.f32 %v230, %v231
    %vm233 = vcmp.eq.f32.partialorder %v230, inf
    %v234 = vsel %vm233, %v230, %v232
    %vm235 = vcmp.eq.f32.partialorder %v230, 0.0
    %v236 = vand.u32 %v230, 2147483648
    %v237 = vsel %vm235, %v236, %v234
    %s238 = vtos %v237
    %s239 = sadd.f32 %s238, 1e-12
    %v240 = vstv %s239
    %v241 = vrcp.pop %v240
    %v242 = vmul.f32 %v215, %v241
    %243 = vst.msk [vmem:[#allocation7] sm:$0x1] %vm219, %v242
    %244 = vst.msk [vmem:[#allocation8] sm:$0x1] %vm117, %v140
    %v245 = vstv %s238
    %vm246 = vcmask 0
    %247 = vst.msk [vmem:[#allocation10] sm:$0x1] %vm246, %v245
    // Predicated region
    $region18: #{tpu_custom_call.1} parent=1 // pred_check
      _
    $region19: #{tpu_custom_call.1} parent=1 // pred_check_branch
      %249 = sbr.rel (0) target = $region21
    $region20: #{tpu_custom_call.1} parent=1 // pred_region
      %s251 = ssub.s32 16, 16
      %252 = vsyncadd [#allocation4], %s251
      %s254 = sshll.u32 [#allocation7], 4
      %s255 = int_to_ptr.vmem [resolvable:$true] %s254
      %257 = dma.vmem_to_hbm [thread:$0]  %s255, 16, %s2, [#allocation4]
    $region21: #{tpu_custom_call.1} parent=1 // pred_fallthru
      _
    // Predicated region
    $region22: #{tpu_custom_call.1} parent=1 // pred_check
      _
    $region23: #{tpu_custom_call.1} parent=1 // pred_check_branch
      %259 = sbr.rel (0) target = $region25
    $region24: #{tpu_custom_call.1} parent=1 // pred_region
      %s261 = ssub.s32 16, 16
      %262 = vsyncadd [#allocation9], %s261
      %s264 = sshll.u32 [#allocation8], 4
      %s265 = int_to_ptr.vmem [resolvable:$true] %s264
      %267 = dma.vmem_to_hbm [thread:$0]  %s265, 16, %s3, [#allocation9]
    $region25: #{tpu_custom_call.1} parent=1 // pred_fallthru
      _
    // Predicated region
    $region26: #{tpu_custom_call.1} parent=1 // pred_check
      _
    $region27: #{tpu_custom_call.1} parent=1 // pred_check_branch
      %269 = sbr.rel (0) target = $region29
    $region28: #{tpu_custom_call.1} parent=1 // pred_region
      %s271 = ssub.s32 16, 16
      %272 = vsyncadd [#allocation9], %s271
      %s274 = sshll.u32 [#allocation10], 4
      %s275 = int_to_ptr.vmem [resolvable:$true] %s274
      %277 = dma.vmem_to_hbm [thread:$0]  %s275, 16, %s4, [#allocation9]
    $region29: #{tpu_custom_call.1} parent=1 // pred_fallthru
      _
    // Predicated region
    $region30: #{tpu_custom_call.1} parent=1 // pred_check
      _
    $region31: #{tpu_custom_call.1} parent=1 // pred_check_branch
      %279 = sbr.rel (0) target = $region33
    $region32: #{tpu_custom_call.1} parent=1 // pred_region
      %280 = dma.done [#allocation4], 16
    $region33: #{tpu_custom_call.1} parent=1 // pred_fallthru
      _
    // Predicated region
    $region34: #{tpu_custom_call.1} parent=1 // pred_check
      _
    $region35: #{tpu_custom_call.1} parent=1 // pred_check_branch
      %282 = sbr.rel (0) target = $region37
    $region36: #{tpu_custom_call.1} parent=1 // pred_region
      %283 = dma.done [#allocation9], 16
    $region37: #{tpu_custom_call.1} parent=1 // pred_fallthru
      _
    // Predicated region
    $region38: #{tpu_custom_call.1} parent=1 // pred_check
      _
    $region39: #{tpu_custom_call.1} parent=1 // pred_check_branch
      %285 = sbr.rel (0) target = $region41
    $region40: #{tpu_custom_call.1} parent=1 // pred_region
      %286 = dma.done [#allocation9], 16
    $region41: #{tpu_custom_call.1} parent=1 // pred_fallthru
      _
    %287 = vsyncpa [#allocation3], 1
    %288 = vsyncpa [#allocation6], 1
    %289 = vsyncpa [#allocation4], 1
    %290 = vsyncpa [#allocation9], 1

</llo_original>
